<compile_context>
chip_gen: v6e
topology: v6e:2x2x1
jax: 0.10.0
libtpu: 0.0.40
codegen_flags: <defaults>
</compile_context>

<pallas_src>
import functools

import jax
import jax.numpy as jnp
from jax.experimental import pallas as pl
from jax.experimental.pallas import tpu as pltpu


def _round_up(x, m):
    return ((x + m - 1) // m) * m


# ----------------------------- Pallas kernel --------------------------------

def _fused_mlp_kernel(*refs, num_layers, widths, compute_dtype):
    """Whole-MLP forward on one batch tile; intermediates stay in VMEM/vregs.

    refs = (x, lin_w, lin_b, w_0, b_0, ..., w_{L-1}, b_{L-1}, out)
    Weights are pre-transposed to [D_in, D_out]; biases are [1, D_out].
    The single output is a lane-dense slab [TILE_N, out_width] holding
    [h_pre_0, vq_0, h_pre_1, vq_1, ..., h_final, zero-pad].
    """
    x_ref = refs[0]
    lin_w_ref, lin_b_ref = refs[1], refs[2]
    layer_refs = refs[3:3 + 2 * num_layers]
    o_ref = refs[-1]

    def linear(a, w_ref, b_ref):
        # MXU matmul (optionally bf16 inputs), f32 accumulation; bias add /
        # ReLU epilogue stays f32 (v5e has no bf16 VPU).
        y = jnp.dot(a.astype(compute_dtype), w_ref[...].astype(compute_dtype),
                    preferred_element_type=jnp.float32)
        return y + b_ref[...].astype(jnp.float32)

    h = x_ref[...].astype(jnp.float32)
    parts = []
    for l in range(num_layers):
        w_ref, b_ref = layer_refs[2 * l], layer_refs[2 * l + 1]
        h = linear(h, w_ref, b_ref)
        if l != num_layers - 1:
            parts.append(h)                               # pre-activation -> h_list
            h = jnp.maximum(h, 0.0)                       # fused ReLU
            # TODO(synk): train-mode dropout masking not implemented (eval => identity).
            parts.append(linear(h, lin_w_ref, lin_b_ref))  # vq = shared `self.linear`
    parts.append(h)                                       # final layer output

    # Pack all outputs into the lane-dense output slab; zero the pad lanes.
    off = 0
    for p, w in zip(parts, widths):
        o_ref[:, off:off + w] = p.astype(o_ref.dtype)
        off += w
    pad = o_ref.shape[-1] - off
    if pad > 0:
        o_ref[:, off:] = jnp.zeros((o_ref.shape[0], pad), o_ref.dtype)


# ------------------------------- Forward ------------------------------------

def mlp_forward(params, feats, num_layers, *, compute_dtype=jnp.float32,
                block_n=512):
    """Returns (h_list, h) matching MLP.forward (norm_type='none', eval)."""
    n, d_in = feats.shape
    lin_w, lin_b = params["linear"]

    # Widths of the packed output slab pieces, in forward order.
    widths = []
    for l, (w, _) in enumerate(params["layers"]):
        if l != num_layers - 1:
            widths.append(w.shape[1])        # h_pre  (hidden_dim)
            widths.append(lin_w.shape[1])    # vq     (input_dim)
    widths.append(params["layers"][-1][0].shape[1])   # final (output_dim)
    total = sum(widths)
    out_width = _round_up(total, 128)        # lane-dense output (>=128, x128)

    bn = min(n, block_n)                     # batch tile (f32-friendly <=512)
    grid = (pl.cdiv(n, bn),)

    flat_inputs = [feats, lin_w, lin_b]
    in_specs = [
        pl.BlockSpec((bn, d_in), lambda i: (i, 0)),
        pl.BlockSpec(lin_w.shape, lambda i: (0, 0)),
        pl.BlockSpec(lin_b.shape, lambda i: (0, 0)),
    ]
    for w, b in params["layers"]:
        flat_inputs += [w, b]
        in_specs += [pl.BlockSpec(w.shape, lambda i: (0, 0)),
                     pl.BlockSpec(b.shape, lambda i: (0, 0))]

    kernel = functools.partial(_fused_mlp_kernel, num_layers=num_layers,
                               widths=tuple(widths), compute_dtype=compute_dtype)
    packed = pl.pallas_call(
        kernel,
        out_shape=jax.ShapeDtypeStruct((n, out_width), feats.dtype),
        grid=grid,
        in_specs=in_specs,
        out_specs=pl.BlockSpec((bn, out_width), lambda i: (i, 0)),
        compiler_params=pltpu.CompilerParams(
            dimension_semantics=("parallel",)),   # batch tiles -> v7x megacore
    )(*flat_inputs)

    # Unpack the slab (cheap slices; intermediates never touched HBM).
    pieces = []
    off = 0
    for w in widths:
        pieces.append(jax.lax.slice_in_dim(packed, off, off + w, axis=1))
        off += w
    return pieces[:-1], pieces[-1]


# ------------------------------ Parameters ----------------------------------

def init_linear_params(key, d_in, d_out, dtype=jnp.float32):
    """PyTorch-style U(-1/sqrt(in), 1/sqrt(in)); weight stored PRE-TRANSPOSED
    as [D_in, D_out], bias as [1, D_out] (clean VMEM layout, no per-call .T)."""
    kw, kb = jax.random.split(key)
    bound = 1.0 / (d_in ** 0.5)
    w_t = jax.random.uniform(kw, (d_in, d_out), dtype, -bound, bound)
    b = jax.random.uniform(kb, (1, d_out), dtype, -bound, bound)
    return w_t, b


def init_mlp_params(key, num_layers, input_dim, hidden_dim, output_dim,
                    dtype=jnp.float32):
    keys = jax.random.split(key, num_layers + 1)
    params = {"linear": init_linear_params(keys[0], hidden_dim, input_dim, dtype),
              "layers": []}
    if num_layers == 1:
        params["layers"].append(init_linear_params(keys[1], input_dim, output_dim, dtype))
    else:
        params["layers"].append(init_linear_params(keys[1], input_dim, hidden_dim, dtype))
        for i in range(num_layers - 2):
            params["layers"].append(
                init_linear_params(keys[2 + i], hidden_dim, hidden_dim, dtype))
        params["layers"].append(
            init_linear_params(keys[num_layers], hidden_dim, output_dim, dtype))
    return params


# ------------------------------ Reference -----------------------------------

def mlp_forward_ref(params, feats, num_layers):
    h = feats
    h_list = []
    lin_w, lin_b = params["linear"]
    for l, (w, b) in enumerate(params["layers"]):
        h = h @ w + b
        if l != num_layers - 1:
            h_list.append(h)
            h = jnp.maximum(h, 0.0)
            h_list.append(h @ lin_w + lin_b)
    return h_list, h


# -------------------------------- Main ---------------------------------------

if __name__ == "__main__":
    num_layers = 3
    input_dim, hidden_dim, output_dim = 16, 32, 8
    batch = 8

    key = jax.random.PRNGKey(0)
    k_params, k_x = jax.random.split(key)
    params = init_mlp_params(k_params, num_layers, input_dim, hidden_dim, output_dim)
    feats = jax.random.normal(k_x, (batch, input_dim), jnp.float32)

    fwd = jax.jit(functools.partial(mlp_forward, num_layers=num_layers))
    h_list, h = fwd(params, feats)
    h = jax.block_until_ready(h)
    h_list = [jax.block_until_ready(t) for t in h_list]

    h_list_ref, h_ref = mlp_forward_ref(params, feats, num_layers)
    assert len(h_list) == len(h_list_ref) == 2 * (num_layers - 1)
    assert h.shape == (batch, output_dim)
    assert jnp.allclose(h, h_ref, atol=1e-5, rtol=1e-5)
    for a, b in zip(h_list, h_list_ref):
        assert a.shape == b.shape
        assert jnp.allclose(a, b, atol=1e-5, rtol=1e-5)

    print("KERNEL_OK")
</pallas_src>

<mosaic_0001>
module attributes {stable_mosaic.version = 11 : i64} {
  func.func @_fused_mlp_kernel(%arg0: i32, %arg1: memref<8x16xf32, #tpu.memory_space<vmem>>, %arg2: memref<32x16xf32, #tpu.memory_space<vmem>>, %arg3: memref<1x16xf32, #tpu.memory_space<vmem>>, %arg4: memref<16x32xf32, #tpu.memory_space<vmem>>, %arg5: memref<1x32xf32, #tpu.memory_space<vmem>>, %arg6: memref<32x32xf32, #tpu.memory_space<vmem>>, %arg7: memref<1x32xf32, #tpu.memory_space<vmem>>, %arg8: memref<32x8xf32, #tpu.memory_space<vmem>>, %arg9: memref<1x8xf32, #tpu.memory_space<vmem>>, %arg10: memref<8x128xf32, #tpu.memory_space<vmem>>) attributes {dimension_semantics = [#tpu.dimension_semantics<parallel>], iteration_bounds = array<i64: 1>, scalar_prefetch = 0 : i64, scratch_operands = 0 : i64, tpu.core_type = #tpu.core_type<tc>, window_params = [{transform_indices = @transform_0, window_bounds = array<i64: 8, 16>}, {pipeline_mode = #tpu.pipeline_mode<synchronous>, transform_indices = @transform_1, window_bounds = array<i64: 32, 16>}, {pipeline_mode = #tpu.pipeline_mode<synchronous>, transform_indices = @transform_2, window_bounds = array<i64: 1, 16>}, {pipeline_mode = #tpu.pipeline_mode<synchronous>, transform_indices = @transform_3, window_bounds = array<i64: 16, 32>}, {pipeline_mode = #tpu.pipeline_mode<synchronous>, transform_indices = @transform_4, window_bounds = array<i64: 1, 32>}, {pipeline_mode = #tpu.pipeline_mode<synchronous>, transform_indices = @transform_5, window_bounds = array<i64: 32, 32>}, {pipeline_mode = #tpu.pipeline_mode<synchronous>, transform_indices = @transform_6, window_bounds = array<i64: 1, 32>}, {pipeline_mode = #tpu.pipeline_mode<synchronous>, transform_indices = @transform_7, window_bounds = array<i64: 32, 8>}, {pipeline_mode = #tpu.pipeline_mode<synchronous>, transform_indices = @transform_8, window_bounds = array<i64: 1, 8>}, {transform_indices = @transform_9, window_bounds = array<i64: 8, 128>}]} {
    %c0 = arith.constant 0 : index
    %c0_0 = arith.constant 0 : index
    %0 = vector.load %arg1[%c0, %c0_0] : memref<8x16xf32, #tpu.memory_space<vmem>>, vector<8x16xf32>
    %c0_1 = arith.constant 0 : index
    %c0_2 = arith.constant 0 : index
    %1 = vector.load %arg4[%c0_1, %c0_2] : memref<16x32xf32, #tpu.memory_space<vmem>>, vector<16x32xf32>
    %cst = arith.constant dense<0.000000e+00> : vector<8x32xf32>
    %2 = tpu.matmul %0, %1, %cst {dimension_numbers = #tpu.dot_dimension_numbers<[1], [0], [0], [1], [0, 0, 1, 1], [], []>} : vector<8x16xf32>, vector<16x32xf32>, vector<8x32xf32> -> vector<8x32xf32>
    %c0_3 = arith.constant 0 : index
    %c0_4 = arith.constant 0 : index
    %3 = vector.load %arg5[%c0_3, %c0_4] : memref<1x32xf32, #tpu.memory_space<vmem>>, vector<1x32xf32>
    %4 = vector.broadcast %3 : vector<1x32xf32> to vector<8x32xf32>
    %5 = arith.addf %2, %4 : vector<8x32xf32>
    %cst_5 = arith.constant 0.000000e+00 : f32
    %6 = vector.broadcast %cst_5 : f32 to vector<8x32xf32>
    %7 = arith.maximumf %5, %6 : vector<8x32xf32>
    %c0_6 = arith.constant 0 : index
    %c0_7 = arith.constant 0 : index
    %8 = vector.load %arg2[%c0_6, %c0_7] : memref<32x16xf32, #tpu.memory_space<vmem>>, vector<32x16xf32>
    %cst_8 = arith.constant dense<0.000000e+00> : vector<8x16xf32>
    %9 = tpu.matmul %7, %8, %cst_8 {dimension_numbers = #tpu.dot_dimension_numbers<[1], [0], [0], [1], [0, 0, 1, 1], [], []>} : vector<8x32xf32>, vector<32x16xf32>, vector<8x16xf32> -> vector<8x16xf32>
    %c0_9 = arith.constant 0 : index
    %c0_10 = arith.constant 0 : index
    %10 = vector.load %arg3[%c0_9, %c0_10] : memref<1x16xf32, #tpu.memory_space<vmem>>, vector<1x16xf32>
    %11 = vector.broadcast %10 : vector<1x16xf32> to vector<8x16xf32>
    %12 = arith.addf %9, %11 : vector<8x16xf32>
    %c0_11 = arith.constant 0 : index
    %c0_12 = arith.constant 0 : index
    %13 = vector.load %arg6[%c0_11, %c0_12] : memref<32x32xf32, #tpu.memory_space<vmem>>, vector<32x32xf32>
    %cst_13 = arith.constant dense<0.000000e+00> : vector<8x32xf32>
    %14 = tpu.matmul %7, %13, %cst_13 {dimension_numbers = #tpu.dot_dimension_numbers<[1], [0], [0], [1], [0, 0, 1, 1], [], []>} : vector<8x32xf32>, vector<32x32xf32>, vector<8x32xf32> -> vector<8x32xf32>
    %c0_14 = arith.constant 0 : index
    %c0_15 = arith.constant 0 : index
    %15 = vector.load %arg7[%c0_14, %c0_15] : memref<1x32xf32, #tpu.memory_space<vmem>>, vector<1x32xf32>
    %16 = vector.broadcast %15 : vector<1x32xf32> to vector<8x32xf32>
    %17 = arith.addf %14, %16 : vector<8x32xf32>
    %cst_16 = arith.constant 0.000000e+00 : f32
    %18 = vector.broadcast %cst_16 : f32 to vector<8x32xf32>
    %19 = arith.maximumf %17, %18 : vector<8x32xf32>
    %c0_17 = arith.constant 0 : index
    %c0_18 = arith.constant 0 : index
    %20 = vector.load %arg2[%c0_17, %c0_18] : memref<32x16xf32, #tpu.memory_space<vmem>>, vector<32x16xf32>
    %cst_19 = arith.constant dense<0.000000e+00> : vector<8x16xf32>
    %21 = tpu.matmul %19, %20, %cst_19 {dimension_numbers = #tpu.dot_dimension_numbers<[1], [0], [0], [1], [0, 0, 1, 1], [], []>} : vector<8x32xf32>, vector<32x16xf32>, vector<8x16xf32> -> vector<8x16xf32>
    %c0_20 = arith.constant 0 : index
    %c0_21 = arith.constant 0 : index
    %22 = vector.load %arg3[%c0_20, %c0_21] : memref<1x16xf32, #tpu.memory_space<vmem>>, vector<1x16xf32>
    %23 = vector.broadcast %22 : vector<1x16xf32> to vector<8x16xf32>
    %24 = arith.addf %21, %23 : vector<8x16xf32>
    %c0_22 = arith.constant 0 : index
    %c0_23 = arith.constant 0 : index
    %25 = vector.load %arg8[%c0_22, %c0_23] : memref<32x8xf32, #tpu.memory_space<vmem>>, vector<32x8xf32>
    %cst_24 = arith.constant dense<0.000000e+00> : vector<8x8xf32>
    %26 = tpu.matmul %19, %25, %cst_24 {dimension_numbers = #tpu.dot_dimension_numbers<[1], [0], [0], [1], [0, 0, 1, 1], [], []>} : vector<8x32xf32>, vector<32x8xf32>, vector<8x8xf32> -> vector<8x8xf32>
    %c0_25 = arith.constant 0 : index
    %c0_26 = arith.constant 0 : index
    %27 = vector.load %arg9[%c0_25, %c0_26] : memref<1x8xf32, #tpu.memory_space<vmem>>, vector<1x8xf32>
    %28 = vector.broadcast %27 : vector<1x8xf32> to vector<8x8xf32>
    %29 = arith.addf %26, %28 : vector<8x8xf32>
    %c0_27 = arith.constant 0 : index
    %c0_28 = arith.constant 0 : index
    %30 = vector.load %arg10[%c0_27, %c0_28] : memref<8x128xf32, #tpu.memory_space<vmem>>, vector<8x32xf32>
    tpu.vector_store %arg10[%c0_27, %c0_28], %5 {strides = array<i32>} : memref<8x128xf32, #tpu.memory_space<vmem>>, vector<8x32xf32>,
    %c0_29 = arith.constant 0 : index
    %c32 = arith.constant 32 : index
    %31 = vector.load %arg10[%c0_29, %c32] : memref<8x128xf32, #tpu.memory_space<vmem>>, vector<8x16xf32>
    tpu.vector_store %arg10[%c0_29, %c32], %12 {strides = array<i32>} : memref<8x128xf32, #tpu.memory_space<vmem>>, vector<8x16xf32>,
    %c0_30 = arith.constant 0 : index
    %c48 = arith.constant 48 : index
    %32 = vector.load %arg10[%c0_30, %c48] : memref<8x128xf32, #tpu.memory_space<vmem>>, vector<8x32xf32>
    tpu.vector_store %arg10[%c0_30, %c48], %17 {strides = array<i32>} : memref<8x128xf32, #tpu.memory_space<vmem>>, vector<8x32xf32>,
    %c0_31 = arith.constant 0 : index
    %c80 = arith.constant 80 : index
    %33 = vector.load %arg10[%c0_31, %c80] : memref<8x128xf32, #tpu.memory_space<vmem>>, vector<8x16xf32>
    tpu.vector_store %arg10[%c0_31, %c80], %24 {strides = array<i32>} : memref<8x128xf32, #tpu.memory_space<vmem>>, vector<8x16xf32>,
    %c0_32 = arith.constant 0 : index
    %c96 = arith.constant 96 : index
    %34 = vector.load %arg10[%c0_32, %c96] : memref<8x128xf32, #tpu.memory_space<vmem>>, vector<8x8xf32>
    tpu.vector_store %arg10[%c0_32, %c96], %29 {strides = array<i32>} : memref<8x128xf32, #tpu.memory_space<vmem>>, vector<8x8xf32>,
    %cst_33 = arith.constant 0.000000e+00 : f32
    %35 = vector.broadcast %cst_33 : f32 to vector<8x24xf32>
    %c0_34 = arith.constant 0 : index
    %c104 = arith.constant 104 : index
    %36 = vector.load %arg10[%c0_34, %c104] : memref<8x128xf32, #tpu.memory_space<vmem>>, vector<8x24xf32>
    tpu.vector_store %arg10[%c0_34, %c104], %35 {strides = array<i32>} : memref<8x128xf32, #tpu.memory_space<vmem>>, vector<8x24xf32>,
    return
  }
  func.func @transform_0(%arg0: i32) -> (i32, i32) {
    %c0_i32 = arith.constant 0 : i32
    %c0_i32_0 = arith.constant 0 : i32
    return %arg0, %c0_i32 : i32, i32
  }
  func.func @transform_1(%arg0: i32) -> (i32, i32) {
    %c0_i32 = arith.constant 0 : i32
    %c0_i32_0 = arith.constant 0 : i32
    %c0_i32_1 = arith.constant 0 : i32
    return %c0_i32, %c0_i32_0 : i32, i32
  }
  func.func @transform_2(%arg0: i32) -> (i32, i32) {
    %c0_i32 = arith.constant 0 : i32
    %c0_i32_0 = arith.constant 0 : i32
    %c0_i32_1 = arith.constant 0 : i32
    return %c0_i32, %c0_i32_0 : i32, i32
  }
  func.func @transform_3(%arg0: i32) -> (i32, i32) {
    %c0_i32 = arith.constant 0 : i32
    %c0_i32_0 = arith.constant 0 : i32
    %c0_i32_1 = arith.constant 0 : i32
    return %c0_i32, %c0_i32_0 : i32, i32
  }
  func.func @transform_4(%arg0: i32) -> (i32, i32) {
    %c0_i32 = arith.constant 0 : i32
    %c0_i32_0 = arith.constant 0 : i32
    %c0_i32_1 = arith.constant 0 : i32
    return %c0_i32, %c0_i32_0 : i32, i32
  }
  func.func @transform_5(%arg0: i32) -> (i32, i32) {
    %c0_i32 = arith.constant 0 : i32
    %c0_i32_0 = arith.constant 0 : i32
    %c0_i32_1 = arith.constant 0 : i32
    return %c0_i32, %c0_i32_0 : i32, i32
  }
  func.func @transform_6(%arg0: i32) -> (i32, i32) {
    %c0_i32 = arith.constant 0 : i32
    %c0_i32_0 = arith.constant 0 : i32
    %c0_i32_1 = arith.constant 0 : i32
    return %c0_i32, %c0_i32_0 : i32, i32
  }
  func.func @transform_7(%arg0: i32) -> (i32, i32) {
    %c0_i32 = arith.constant 0 : i32
    %c0_i32_0 = arith.constant 0 : i32
    %c0_i32_1 = arith.constant 0 : i32
    return %c0_i32, %c0_i32_0 : i32, i32
  }
  func.func @transform_8(%arg0: i32) -> (i32, i32) {
    %c0_i32 = arith.constant 0 : i32
    %c0_i32_0 = arith.constant 0 : i32
    %c0_i32_1 = arith.constant 0 : i32
    return %c0_i32, %c0_i32_0 : i32, i32
  }
  func.func @transform_9(%arg0: i32) -> (i32, i32) {
    %c0_i32 = arith.constant 0 : i32
    %c0_i32_0 = arith.constant 0 : i32
    return %arg0, %c0_i32 : i32, i32
  }
}

</mosaic_0001>

<llo_original>
// kernel: mlp_forward.1
$region0: #{mlp_forward.1}
  #allocation0 [shape = 'u32[]', space=smem, size = 0x4, offset = 0x4, fixed_abs, tag = 'smem constant byte address 0x4 - core index']
  #allocation1 [shape = 'u32[144,128]{1,0:T(1,128)}', space=vmem, size = 0x12000, scoped, tag = 'internal scratch']
  %s0 = inlined_call_operand.vmem [shape: f32[8,16], index: 0, kind: input, shape index: {}]
  %s1 = inlined_call_operand.vmem [shape: f32[32,16], index: 1, kind: input, shape index: {}]
  %s2 = inlined_call_operand.vmem [shape: f32[1,16], index: 2, kind: input, shape index: {}]
  %s3 = inlined_call_operand.vmem [shape: f32[16,32], index: 3, kind: input, shape index: {}]
  %s4 = inlined_call_operand.vmem [shape: f32[1,32], index: 4, kind: input, shape index: {}]
  %s5 = inlined_call_operand.vmem [shape: f32[32,32], index: 5, kind: input, shape index: {}]
  %s6 = inlined_call_operand.vmem [shape: f32[1,32], index: 6, kind: input, shape index: {}]
  %s7 = inlined_call_operand.vmem [shape: f32[32,8], index: 7, kind: input, shape index: {}]
  %s8 = inlined_call_operand.vmem [shape: f32[1,8], index: 8, kind: input, shape index: {}]
  %s9 = inlined_call_operand.vmem [shape: f32[8,128], index: 9, kind: output, shape index: {}]
  %s10 = sld [smem:[#allocation0]]
  $region46: #{mlp_forward.1} parent=0
    _
  %s12 = ssub.s32 1, %s10
  %s13 = scalar_select 0, %s12, %s10
  // Predicated region
  $region2: #{mlp_forward.1} parent=0 // pred_check
    _
  $region3: #{mlp_forward.1} parent=0 // pred_check_branch
    %15 = sbr.rel (0) target = $region5
  $region4: #{mlp_forward.1} parent=0 // pred_region
    _
  $region5: #{mlp_forward.1} parent=0 // pred_fallthru
    _
  // Predicated region
  $region6: #{mlp_forward.1} parent=0 // pred_check
    _
  $region7: #{mlp_forward.1} parent=0 // pred_check_branch
    %17 = sbr.rel (0) target = $region9
  $region8: #{mlp_forward.1} parent=0 // pred_region
    _
  $region9: #{mlp_forward.1} parent=0 // pred_fallthru
    _
  // Predicated region
  $region10: #{mlp_forward.1} parent=0 // pred_check
    _
  $region11: #{mlp_forward.1} parent=0 // pred_check_branch
    %19 = sbr.rel (0) target = $region13
  $region12: #{mlp_forward.1} parent=0 // pred_region
    _
  $region13: #{mlp_forward.1} parent=0 // pred_fallthru
    _
  // Predicated region
  $region14: #{mlp_forward.1} parent=0 // pred_check
    _
  $region15: #{mlp_forward.1} parent=0 // pred_check_branch
    %21 = sbr.rel (0) target = $region17
  $region16: #{mlp_forward.1} parent=0 // pred_region
    _
  $region17: #{mlp_forward.1} parent=0 // pred_fallthru
    _
  // Predicated region
  $region18: #{mlp_forward.1} parent=0 // pred_check
    _
  $region19: #{mlp_forward.1} parent=0 // pred_check_branch
    %23 = sbr.rel (0) target = $region21
  $region20: #{mlp_forward.1} parent=0 // pred_region
    _
  $region21: #{mlp_forward.1} parent=0 // pred_fallthru
    _
  // Predicated region
  $region22: #{mlp_forward.1} parent=0 // pred_check
    _
  $region23: #{mlp_forward.1} parent=0 // pred_check_branch
    %25 = sbr.rel (0) target = $region25
  $region24: #{mlp_forward.1} parent=0 // pred_region
    _
  $region25: #{mlp_forward.1} parent=0 // pred_fallthru
    _
  // Predicated region
  $region26: #{mlp_forward.1} parent=0 // pred_check
    _
  $region27: #{mlp_forward.1} parent=0 // pred_check_branch
    %27 = sbr.rel (0) target = $region29
  $region28: #{mlp_forward.1} parent=0 // pred_region
    _
  $region29: #{mlp_forward.1} parent=0 // pred_fallthru
    _
  // Predicated region
  $region30: #{mlp_forward.1} parent=0 // pred_check
    _
  $region31: #{mlp_forward.1} parent=0 // pred_check_branch
    %29 = sbr.rel (0) target = $region33
  $region32: #{mlp_forward.1} parent=0 // pred_region
    _
  $region33: #{mlp_forward.1} parent=0 // pred_fallthru
    _
  // Predicated region
  $region34: #{mlp_forward.1} parent=0 // pred_check
    _
  $region35: #{mlp_forward.1} parent=0 // pred_check_branch
    %31 = sbr.rel (0) target = $region37
  $region36: #{mlp_forward.1} parent=0 // pred_region
    _
  $region37: #{mlp_forward.1} parent=0 // pred_fallthru
    _
  %v32 = vld [vmem:[%s0] sm:$0xff]
  %v33 = vld [vmem:[%s3] sm:$0xff]
  %v34 = vld [vmem:[%s3 + $0x8] sm:$0xff]
  %v35 = vld [vmem:[%s4] sm:$0x1]
  %v37 = vlaneseq
  %v38 = vshrl.u32 %v37, 7
  %v39 = vsub.s32 0, %v38
  %v40 = vrot.slane %v35, %v39
  %vm42 = vcmask 130048
  %v44 = vsel %vm42, %v32, 0
  %46 = vmatprep.subr.mxu0 0.0
  %47 = vmatpush1.msra.mxu0 0.0
  %48 = vmatprep.subr.mxu0 0.0
  %49 = vmatpush1.msra.mxu0 0.0
  %50 = vmatprep.subr.mxu0 0.0
  %51 = vmatpush1.msra.mxu0 0.0
  %52 = vmatprep.subr.mxu0 0.0
  %53 = vmatpush1.msra.mxu0 0.0
  %54 = vmatprep.subr.mxu0 0.0
  %55 = vmatpush1.msra.mxu0 0.0
  %56 = vmatprep.subr.mxu0 0.0
  %57 = vmatpush1.msra.mxu0 0.0
  %58 = vmatprep.subr.mxu0 0.0
  %59 = vmatpush1.msra.mxu0 0.0
  %60 = vmatprep.subr.mxu0 0.0
  %61 = vmatpush1.msra.mxu0 0.0
  %62 = vmatprep.subr.mxu0 0.0
  %63 = vmatpush1.msra.mxu0 0.0
  %64 = vmatprep.subr.mxu0 0.0
  %65 = vmatpush1.msra.mxu0 0.0
  %66 = vmatprep.subr.mxu0 0.0
  %67 = vmatpush1.msra.mxu0 0.0
  %68 = vmatprep.subr.mxu0 0.0
  %69 = vmatpush1.msra.mxu0 0.0
  %70 = vmatprep.subr.mxu0 0.0
  %71 = vmatpush1.msra.mxu0 0.0
  %72 = vmatprep.subr.mxu0 0.0
  %73 = vmatpush1.msra.mxu0 0.0
  %74 = vmatprep.subr.mxu0 0.0
  %75 = vmatpush1.msra.mxu0 %v34
  %76 = vmatprep.subr.mxu0 0.0
  %77 = vmatpush1.msra.mxu0 %v33
  %78 = vmatprep.subr.mxu0 0.0
  %79 = vmatpush2.msra.mxu0 0.0
  %80 = vmatprep.subr.mxu0 0.0
  %81 = vmatpush2.msra.mxu0 0.0
  %82 = vmatprep.subr.mxu0 0.0
  %83 = vmatpush2.msra.mxu0 0.0
  %84 = vmatprep.subr.mxu0 0.0
  %85 = vmatpush2.msra.mxu0 0.0
  %86 = vmatprep.subr.mxu0 0.0
  %87 = vmatpush2.msra.mxu0 0.0
  %88 = vmatprep.subr.mxu0 0.0
  %89 = vmatpush2.msra.mxu0 0.0
  %90 = vmatprep.subr.mxu0 0.0
  %91 = vmatpush2.msra.mxu0 0.0
  %92 = vmatprep.subr.mxu0 0.0
  %93 = vmatpush2.msra.mxu0 0.0
  %94 = vmatprep.subr.mxu0 0.0
  %95 = vmatpush2.msra.mxu0 0.0
  %96 = vmatprep.subr.mxu0 0.0
  %97 = vmatpush2.msra.mxu0 0.0
  %98 = vmatprep.subr.mxu0 0.0
  %99 = vmatpush2.msra.mxu0 0.0
  %100 = vmatprep.subr.mxu0 0.0
  %101 = vmatpush2.msra.mxu0 0.0
  %102 = vmatprep.subr.mxu0 0.0
  %103 = vmatpush2.msra.mxu0 0.0
  %104 = vmatprep.subr.mxu0 0.0
  %105 = vmatpush2.msra.mxu0 0.0
  %106 = vmatprep.subr.mxu0 0.0
  %107 = vmatpush2.msra.mxu0 0.0
  %108 = vmatprep.subr.mxu0 0.0
  %109 = vmatpush2.msra.mxu0 0.0
  %110 = vmatprep.mubr.f32.mxu0 0.0
  %111 = vmatmul.mubr.f32.gmra.mxu0 %v44
  %v112 = vpop.f32.mrf.mxu0
  %v113 = vadd.f32 %v40, %v112
  %v114 = vpop.f32.mrf.mxu0
  %115 = vdwg.mxu0
  %v116 = vmax.f32 %v113, 0.0
  %v117 = vld [vmem:[%s1] sm:$0xff]
  %v118 = vld [vmem:[%s1 + $0x8] sm:$0xff]
  %v119 = vld [vmem:[%s1 + $0x10] sm:$0xff]
  %v120 = vld [vmem:[%s1 + $0x18] sm:$0xff]
  %v121 = vld [vmem:[%s2] sm:$0x1]
  %v123 = vlaneseq
  %v124 = vshrl.u32 %v123, 7
  %v125 = vsub.s32 0, %v124
  %v126 = vrot.slane %v121, %v125
  %vm128 = vcmask 261120
  %v130 = vsel %vm128, %v116, 0
  %132 = vmatprep.subr.mxu0 0.0
  %133 = vmatpush1.msra.mxu0 0.0
  %134 = vmatprep.subr.mxu0 0.0
  %135 = vmatpush1.msra.mxu0 0.0
  %136 = vmatprep.subr.mxu0 0.0
  %137 = vmatpush1.msra.mxu0 0.0
  %138 = vmatprep.subr.mxu0 0.0
  %139 = vmatpush1.msra.mxu0 0.0
  %140 = vmatprep.subr.mxu0 0.0
  %141 = vmatpush1.msra.mxu0 0.0
  %142 = vmatprep.subr.mxu0 0.0
  %143 = vmatpush1.msra.mxu0 0.0
  %144 = vmatprep.subr.mxu0 0.0
  %145 = vmatpush1.msra.mxu0 0.0
  %146 = vmatprep.subr.mxu0 0.0
  %147 = vmatpush1.msra.mxu0 0.0
  %148 = vmatprep.subr.mxu0 0.0
  %149 = vmatpush1.msra.mxu0 0.0
  %150 = vmatprep.subr.mxu0 0.0
  %151 = vmatpush1.msra.mxu0 0.0
  %152 = vmatprep.subr.mxu0 0.0
  %153 = vmatpush1.msra.mxu0 0.0
  %154 = vmatprep.subr.mxu0 0.0
  %155 = vmatpush1.msra.mxu0 0.0
  %156 = vmatprep.subr.mxu0 0.0
  %157 = vmatpush1.msra.mxu0 %v120
  %158 = vmatprep.subr.mxu0 0.0
  %159 = vmatpush1.msra.mxu0 %v119
  %160 = vmatprep.subr.mxu0 0.0
  %161 = vmatpush1.msra.mxu0 %v118
  %162 = vmatprep.subr.mxu0 0.0
  %163 = vmatpush1.msra.mxu0 %v117
  %164 = vmatprep.subr.mxu0 0.0
  %165 = vmatpush2.msra.mxu0 0.0
  %166 = vmatprep.subr.mxu0 0.0
  %167 = vmatpush2.msra.mxu0 0.0
  %168 = vmatprep.subr.mxu0 0.0
  %169 = vmatpush2.msra.mxu0 0.0
  %170 = vmatprep.subr.mxu0 0.0
  %171 = vmatpush2.msra.mxu0 0.0
  %172 = vmatprep.subr.mxu0 0.0
  %173 = vmatpush2.msra.mxu0 0.0
  %174 = vmatprep.subr.mxu0 0.0
  %175 = vmatpush2.msra.mxu0 0.0
  %176 = vmatprep.subr.mxu0 0.0
  %177 = vmatpush2.msra.mxu0 0.0
  %178 = vmatprep.subr.mxu0 0.0
  %179 = vmatpush2.msra.mxu0 0.0
  %180 = vmatprep.subr.mxu0 0.0
  %181 = vmatpush2.msra.mxu0 0.0
  %182 = vmatprep.subr.mxu0 0.0
  %183 = vmatpush2.msra.mxu0 0.0
  %184 = vmatprep.subr.mxu0 0.0
  %185 = vmatpush2.msra.mxu0 0.0
  %186 = vmatprep.subr.mxu0 0.0
  %187 = vmatpush2.msra.mxu0 0.0
  %188 = vmatprep.subr.mxu0 0.0
  %189 = vmatpush2.msra.mxu0 0.0
  %190 = vmatprep.subr.mxu0 0.0
  %191 = vmatpush2.msra.mxu0 0.0
  %192 = vmatprep.subr.mxu0 0.0
  %193 = vmatpush2.msra.mxu0 0.0
  %194 = vmatprep.subr.mxu0 0.0
  %195 = vmatpush2.msra.mxu0 0.0
  %196 = vmatprep.mubr.f32.mxu0 0.0
  %197 = vmatmul.mubr.f32.gmra.mxu0 %v130
  %v198 = vpop.f32.mrf.mxu0
  %v199 = vadd.f32 %v126, %v198
  %v200 = vpop.f32.mrf.mxu0
  %201 = vdwg.mxu0
  %v202 = vld [vmem:[%s5] sm:$0xff]
  %v203 = vld [vmem:[%s5 + $0x8] sm:$0xff]
  %v204 = vld [vmem:[%s5 + $0x10] sm:$0xff]
  %v205 = vld [vmem:[%s5 + $0x18] sm:$0xff]
  %v206 = vld [vmem:[%s6] sm:$0x1]
  %v208 = vlaneseq
  %v209 = vshrl.u32 %v208, 7
  %v210 = vsub.s32 0, %v209
  %v211 = vrot.slane %v206, %v210
  %213 = vmatprep.subr.mxu0 0.0
  %214 = vmatpush1.msra.mxu0 0.0
  %215 = vmatprep.subr.mxu0 0.0
  %216 = vmatpush1.msra.mxu0 0.0
  %217 = vmatprep.subr.mxu0 0.0
  %218 = vmatpush1.msra.mxu0 0.0
  %219 = vmatprep.subr.mxu0 0.0
  %220 = vmatpush1.msra.mxu0 0.0
  %221 = vmatprep.subr.mxu0 0.0
  %222 = vmatpush1.msra.mxu0 0.0
  %223 = vmatprep.subr.mxu0 0.0
  %224 = vmatpush1.msra.mxu0 0.0
  %225 = vmatprep.subr.mxu0 0.0
  %226 = vmatpush1.msra.mxu0 0.0
  %227 = vmatprep.subr.mxu0 0.0
  %228 = vmatpush1.msra.mxu0 0.0
  %229 = vmatprep.subr.mxu0 0.0
  %230 = vmatpush1.msra.mxu0 0.0
  %231 = vmatprep.subr.mxu0 0.0
  %232 = vmatpush1.msra.mxu0 0.0
  %233 = vmatprep.subr.mxu0 0.0
  %234 = vmatpush1.msra.mxu0 0.0
  %235 = vmatprep.subr.mxu0 0.0
  %236 = vmatpush1.msra.mxu0 0.0
  %237 = vmatprep.subr.mxu0 0.0
  %238 = vmatpush1.msra.mxu0 %v205
  %239 = vmatprep.subr.mxu0 0.0
  %240 = vmatpush1.msra.mxu0 %v204
  %241 = vmatprep.subr.mxu0 0.0
  %242 = vmatpush1.msra.mxu0 %v203
  %243 = vmatprep.subr.mxu0 0.0
  %244 = vmatpush1.msra.mxu0 %v202
  %245 = vmatprep.subr.mxu0 0.0
  %246 = vmatpush2.msra.mxu0 0.0
  %247 = vmatprep.subr.mxu0 0.0
  %248 = vmatpush2.msra.mxu0 0.0
  %249 = vmatprep.subr.mxu0 0.0
  %250 = vmatpush2.msra.mxu0 0.0
  %251 = vmatprep.subr.mxu0 0.0
  %252 = vmatpush2.msra.mxu0 0.0
  %253 = vmatprep.subr.mxu0 0.0
  %254 = vmatpush2.msra.mxu0 0.0
  %255 = vmatprep.subr.mxu0 0.0
  %256 = vmatpush2.msra.mxu0 0.0
  %257 = vmatprep.subr.mxu0 0.0
  %258 = vmatpush2.msra.mxu0 0.0
  %259 = vmatprep.subr.mxu0 0.0
  %260 = vmatpush2.msra.mxu0 0.0
  %261 = vmatprep.subr.mxu0 0.0
  %262 = vmatpush2.msra.mxu0 0.0
  %263 = vmatprep.subr.mxu0 0.0
  %264 = vmatpush2.msra.mxu0 0.0
  %265 = vmatprep.subr.mxu0 0.0
  %266 = vmatpush2.msra.mxu0 0.0
  %267 = vmatprep.subr.mxu0 0.0
  %268 = vmatpush2.msra.mxu0 0.0
  %269 = vmatprep.subr.mxu0 0.0
  %270 = vmatpush2.msra.mxu0 0.0
  %271 = vmatprep.subr.mxu0 0.0
  %272 = vmatpush2.msra.mxu0 0.0
  %273 = vmatprep.subr.mxu0 0.0
  %274 = vmatpush2.msra.mxu0 0.0
  %275 = vmatprep.subr.mxu0 0.0
  %276 = vmatpush2.msra.mxu0 0.0
  %277 = vmatprep.mubr.f32.mxu0 0.0
  %278 = vmatmul.mubr.f32.gmra.mxu0 %v130
  %v279 = vpop.f32.mrf.mxu0
  %v280 = vadd.f32 %v211, %v279
  %v281 = vpop.f32.mrf.mxu0
  %282 = vdwg.mxu0
  %v283 = vmax.f32 %v280, 0.0
  %v285 = vsel %vm128, %v283, 0
  %287 = vmatprep.subr.mxu0 0.0
  %288 = vmatpush1.msra.mxu0 0.0
  %289 = vmatprep.subr.mxu0 0.0
  %290 = vmatpush1.msra.mxu0 0.0
  %291 = vmatprep.subr.mxu0 0.0
  %292 = vmatpush1.msra.mxu0 0.0
  %293 = vmatprep.subr.mxu0 0.0
  %294 = vmatpush1.msra.mxu0 0.0
  %295 = vmatprep.subr.mxu0 0.0
  %296 = vmatpush1.msra.mxu0 0.0
  %297 = vmatprep.subr.mxu0 0.0
  %298 = vmatpush1.msra.mxu0 0.0
  %299 = vmatprep.subr.mxu0 0.0
  %300 = vmatpush1.msra.mxu0 0.0
  %301 = vmatprep.subr.mxu0 0.0
  %302 = vmatpush1.msra.mxu0 0.0
  %303 = vmatprep.subr.mxu0 0.0
  %304 = vmatpush1.msra.mxu0 0.0
  %305 = vmatprep.subr.mxu0 0.0
  %306 = vmatpush1.msra.mxu0 0.0
  %307 = vmatprep.subr.mxu0 0.0
  %308 = vmatpush1.msra.mxu0 0.0
  %309 = vmatprep.subr.mxu0 0.0
  %310 = vmatpush1.msra.mxu0 0.0
  %311 = vmatprep.subr.mxu0 0.0
  %312 = vmatpush1.msra.mxu0 %v120
  %313 = vmatprep.subr.mxu0 0.0
  %314 = vmatpush1.msra.mxu0 %v119
  %315 = vmatprep.subr.mxu0 0.0
  %316 = vmatpush1.msra.mxu0 %v118
  %317 = vmatprep.subr.mxu0 0.0
  %318 = vmatpush1.msra.mxu0 %v117
  %319 = vmatprep.subr.mxu0 0.0
  %320 = vmatpush2.msra.mxu0 0.0
  %321 = vmatprep.subr.mxu0 0.0
  %322 = vmatpush2.msra.mxu0 0.0
  %323 = vmatprep.subr.mxu0 0.0
  %324 = vmatpush2.msra.mxu0 0.0
  %325 = vmatprep.subr.mxu0 0.0
  %326 = vmatpush2.msra.mxu0 0.0
  %327 = vmatprep.subr.mxu0 0.0
  %328 = vmatpush2.msra.mxu0 0.0
  %329 = vmatprep.subr.mxu0 0.0
  %330 = vmatpush2.msra.mxu0 0.0
  %331 = vmatprep.subr.mxu0 0.0
  %332 = vmatpush2.msra.mxu0 0.0
  %333 = vmatprep.subr.mxu0 0.0
  %334 = vmatpush2.msra.mxu0 0.0
  %335 = vmatprep.subr.mxu0 0.0
  %336 = vmatpush2.msra.mxu0 0.0
  %337 = vmatprep.subr.mxu0 0.0
  %338 = vmatpush2.msra.mxu0 0.0
  %339 = vmatprep.subr.mxu0 0.0
  %340 = vmatpush2.msra.mxu0 0.0
  %341 = vmatprep.subr.mxu0 0.0
  %342 = vmatpush2.msra.mxu0 0.0
  %343 = vmatprep.subr.mxu0 0.0
  %344 = vmatpush2.msra.mxu0 0.0
  %345 = vmatprep.subr.mxu0 0.0
  %346 = vmatpush2.msra.mxu0 0.0
  %347 = vmatprep.subr.mxu0 0.0
  %348 = vmatpush2.msra.mxu0 0.0
  %349 = vmatprep.subr.mxu0 0.0
  %350 = vmatpush2.msra.mxu0 0.0
  %351 = vmatprep.mubr.f32.mxu0 0.0
  %352 = vmatmul.mubr.f32.gmra.mxu0 %v285
  %v353 = vpop.f32.mrf.mxu0
  %v354 = vadd.f32 %v126, %v353
  %v355 = vpop.f32.mrf.mxu0
  %356 = vdwg.mxu0
  %v357 = vld [vmem:[%s7] sm:$0xff]
  %v358 = vld [vmem:[%s7 + $0x8] sm:$0xff]
  %v359 = vld [vmem:[%s7 + $0x10] sm:$0xff]
  %v360 = vld [vmem:[%s7 + $0x18] sm:$0xff]
  %v361 = vld [vmem:[%s8] sm:$0x1]
  %v363 = vlaneseq
  %v364 = vshrl.u32 %v363, 7
  %v365 = vsub.s32 0, %v364
  %v366 = vrot.slane %v361, %v365
  %368 = vmatprep.subr.mxu0 0.0
  %369 = vmatpush1.msra.mxu0 0.0
  %370 = vmatprep.subr.mxu0 0.0
  %371 = vmatpush1.msra.mxu0 0.0
  %372 = vmatprep.subr.mxu0 0.0
  %373 = vmatpush1.msra.mxu0 0.0
  %374 = vmatprep.subr.mxu0 0.0
  %375 = vmatpush1.msra.mxu0 0.0
  %376 = vmatprep.subr.mxu0 0.0
  %377 = vmatpush1.msra.mxu0 0.0
  %378 = vmatprep.subr.mxu0 0.0
  %379 = vmatpush1.msra.mxu0 0.0
  %380 = vmatprep.subr.mxu0 0.0
  %381 = vmatpush1.msra.mxu0 0.0
  %382 = vmatprep.subr.mxu0 0.0
  %383 = vmatpush1.msra.mxu0 0.0
  %384 = vmatprep.subr.mxu0 0.0
  %385 = vmatpush1.msra.mxu0 0.0
  %386 = vmatprep.subr.mxu0 0.0
  %387 = vmatpush1.msra.mxu0 0.0
  %388 = vmatprep.subr.mxu0 0.0
  %389 = vmatpush1.msra.mxu0 0.0
  %390 = vmatprep.subr.mxu0 0.0
  %391 = vmatpush1.msra.mxu0 0.0
  %392 = vmatprep.subr.mxu0 0.0
  %393 = vmatpush1.msra.mxu0 %v360
  %394 = vmatprep.subr.mxu0 0.0
  %395 = vmatpush1.msra.mxu0 %v359
  %396 = vmatprep.subr.mxu0 0.0
  %397 = vmatpush1.msra.mxu0 %v358
  %398 = vmatprep.subr.mxu0 0.0
  %399 = vmatpush1.msra.mxu0 %v357
  %400 = vmatprep.subr.mxu0 0.0
  %401 = vmatpush2.msra.mxu0 0.0
  %402 = vmatprep.subr.mxu0 0.0
  %403 = vmatpush2.msra.mxu0 0.0
  %404 = vmatprep.subr.mxu0 0.0
  %405 = vmatpush2.msra.mxu0 0.0
  %406 = vmatprep.subr.mxu0 0.0
  %407 = vmatpush2.msra.mxu0 0.0
  %408 = vmatprep.subr.mxu0 0.0
  %409 = vmatpush2.msra.mxu0 0.0
  %410 = vmatprep.subr.mxu0 0.0
  %411 = vmatpush2.msra.mxu0 0.0
  %412 = vmatprep.subr.mxu0 0.0
  %413 = vmatpush2.msra.mxu0 0.0
  %414 = vmatprep.subr.mxu0 0.0
  %415 = vmatpush2.msra.mxu0 0.0
  %416 = vmatprep.subr.mxu0 0.0
  %417 = vmatpush2.msra.mxu0 0.0
  %418 = vmatprep.subr.mxu0 0.0
  %419 = vmatpush2.msra.mxu0 0.0
  %420 = vmatprep.subr.mxu0 0.0
  %421 = vmatpush2.msra.mxu0 0.0
  %422 = vmatprep.subr.mxu0 0.0
  %423 = vmatpush2.msra.mxu0 0.0
  %424 = vmatprep.subr.mxu0 0.0
  %425 = vmatpush2.msra.mxu0 0.0
  %426 = vmatprep.subr.mxu0 0.0
  %427 = vmatpush2.msra.mxu0 0.0
  %428 = vmatprep.subr.mxu0 0.0
  %429 = vmatpush2.msra.mxu0 0.0
  %430 = vmatprep.subr.mxu0 0.0
  %431 = vmatpush2.msra.mxu0 0.0
  %432 = vmatprep.mubr.f32.mxu0 0.0
  %433 = vmatmul.mubr.f32.gmra.mxu0 %v285
  %v434 = vpop.f32.mrf.mxu0
  %v435 = vadd.f32 %v366, %v434
  %v436 = vpop.f32.mrf.mxu0
  %437 = vdwg.mxu0
  %438 = vst.msk [vmem:[%s9] sm:$0xff] %vm128, %v113
  %440 = vrot.lane.b32.xlu0 %v199, 32
  %v441 = vpop.permute.xlu0 %440
  %vm443 = vcmask 392448
  %444 = vst.msk [vmem:[%s9] sm:$0xff] %vm443, %v441
  %446 = vrot.lane.b32.xlu0 %v280, 48
  %v447 = vpop.permute.xlu0 %446
  %vm449 = vcmask 654720
  %450 = vst.msk [vmem:[%s9] sm:$0xff] %vm449, %v447
  %452 = vrot.lane.b32.xlu0 %v354, 80
  %v453 = vpop.permute.xlu0 %452
  %vm455 = vcmask 786048
  %456 = vst.msk [vmem:[%s9] sm:$0xff] %vm455, %v453
  %458 = vrot.lane.b32.xlu0 %v435, 96
  %v459 = vpop.permute.xlu0 %458
  %vm461 = vcmask 851712
  %462 = vst.msk [vmem:[%s9] sm:$0xff] %vm461, %v459
  %vm463 = vcmask 1048384
  %464 = vst.msk [vmem:[%s9] sm:$0xff] %vm463, 0.0
  // Predicated region
  $region38: #{mlp_forward.1} parent=0 // pred_check
    _
  $region39: #{mlp_forward.1} parent=0 // pred_check_branch
    %466 = sbr.rel (0) target = $region41
  $region40: #{mlp_forward.1} parent=0 // pred_region
    _
  $region41: #{mlp_forward.1} parent=0 // pred_fallthru
    _
  // Predicated region
  $region42: #{mlp_forward.1} parent=0 // pred_check
    _
  $region43: #{mlp_forward.1} parent=0 // pred_check_branch
    %468 = sbr.rel (0) target = $region45
  $region44: #{mlp_forward.1} parent=0 // pred_region
    _
  $region45: #{mlp_forward.1} parent=0 // pred_fallthru
    _

</llo_original>
